<compile_context>
chip_gen: v5e
topology: v5e:2x2
jax: 0.10.0
libtpu: 0.0.40
codegen_flags: <defaults>
</compile_context>

<pallas_src>
import functools

import jax
import jax.numpy as jnp
from jax.experimental import pallas as pl
from jax.experimental.pallas import tpu as pltpu


LANES = 128
MAX_TILE_ROWS = 2048  # (2048,128) f32 = 1 MiB per input block.


def _focal_weight(one_minus_pt, gamma):
    """(1 - pt) ** gamma, strength-reduced for small integer gamma."""
    g = float(gamma)
    if g == 0.0:
        return jnp.ones_like(one_minus_pt)
    if g.is_integer() and 1.0 <= g <= 4.0:
        r = one_minus_pt
        for _ in range(int(g) - 1):
            r = r * one_minus_pt
        return r
    return one_minus_pt ** jnp.float32(g)


def _focal_partial_kernel(logits_ref, labels_ref, out_ref, *,
                          alpha, gamma, eps, label_smoothing,
                          tile_rows, n_valid, needs_mask):
    i = pl.program_id(0)

    x = logits_ref[...].astype(jnp.float32)
    y = labels_ref[...].astype(jnp.float32)

    if label_smoothing > 0:
        y = y * (1.0 - label_smoothing) + label_smoothing / 2.0

    probs = jax.nn.sigmoid(x)
    pt = y * probs + (1.0 - y) * (1.0 - probs)
    alpha_t = y * alpha + (1.0 - y) * (1.0 - alpha)
    fw = _focal_weight(1.0 - pt, gamma)
    log_pt = jnp.log(jnp.clip(pt, eps, 1.0))
    loss = -alpha_t * fw * log_pt

    if not needs_mask:
        # Every element of every block is valid: no mask work at all.
        out_ref[...] = jnp.sum(loss, axis=0, keepdims=True)
    else:
        last = pl.num_programs(0) - 1

        @pl.when(i < last)
        def _():
            out_ref[...] = jnp.sum(loss, axis=0, keepdims=True)

        @pl.when(i == last)
        def _():
            # Only the last block can contain lane-padding / ragged-tail garbage.
            row_ids = jax.lax.broadcasted_iota(jnp.int32, (tile_rows, LANES), 0)
            col_ids = jax.lax.broadcasted_iota(jnp.int32, (tile_rows, LANES), 1)
            gidx = (i * tile_rows + row_ids) * LANES + col_ids
            masked = jnp.where(gidx < n_valid, loss, 0.0)
            out_ref[...] = jnp.sum(masked, axis=0, keepdims=True)


def focal_loss(logits, labels, *, alpha=0.25, gamma=2.0, reduction="mean",
               eps=1e-6, label_smoothing=0.0):
    """Focal loss matching PyTorch FocalLoss.forward semantics.

    logits, labels: (B, C, H, W). 'mean'/'sum' go through a fused Pallas kernel.
    """
    assert logits.shape == labels.shape

    if reduction == "none":
        # Elementwise map, no reduction hot path -> keep in plain JAX.
        # TODO(synk): could also emit the full (B,C,H,W) loss map from a Pallas kernel.
        y = labels.astype(jnp.float32)
        if label_smoothing > 0:
            y = y * (1 - label_smoothing) + label_smoothing / 2
        probs = jax.nn.sigmoid(logits.astype(jnp.float32))
        pt = y * probs + (1 - y) * (1 - probs)
        alpha_t = y * alpha + (1 - y) * (1 - alpha)
        fw = (1 - pt) ** gamma
        log_pt = jnp.log(jnp.clip(pt, eps, 1.0))
        return -alpha_t * fw * log_pt

    n = logits.size
    x = jnp.ravel(logits)   # keep native dtype (bf16 stays bf16 in HBM)
    y = jnp.ravel(labels)

    # Pad to a multiple of 128 lanes only when actually needed (usually a no-op).
    lane_pad = -n % LANES
    if lane_pad:
        x = jnp.pad(x, (0, lane_pad))
        y = jnp.pad(y, (0, lane_pad))
    rows = (n + lane_pad) // LANES
    x2 = x.reshape(rows, LANES)
    y2 = y.reshape(rows, LANES)

    if rows <= MAX_TILE_ROWS:
        tile_rows = rows            # single block == full array dims
    else:
        tile_rows = MAX_TILE_ROWS   # large block; ragged tail handled by mask
    grid = pl.cdiv(rows, tile_rows)
    needs_mask = (grid * tile_rows * LANES) != n

    kernel = functools.partial(
        _focal_partial_kernel,
        alpha=float(alpha), gamma=float(gamma), eps=float(eps),
        label_smoothing=float(label_smoothing),
        tile_rows=tile_rows, n_valid=n, needs_mask=needs_mask)

    partials = pl.pallas_call(
        kernel,
        out_shape=jax.ShapeDtypeStruct((grid, LANES), jnp.float32),
        grid_spec=pltpu.PrefetchScalarGridSpec(
            num_scalar_prefetch=0,
            grid=(grid,),
            in_specs=[
                pl.BlockSpec((tile_rows, LANES), lambda i: (i, 0)),
                pl.BlockSpec((tile_rows, LANES), lambda i: (i, 0)),
            ],
            out_specs=pl.BlockSpec((1, LANES), lambda i: (i, 0)),
        ),
        compiler_params=pltpu.CompilerParams(
            dimension_semantics=("parallel",)),
    )(x2, y2)

    total = jnp.sum(partials)
    if reduction == "sum":
        return total
    return total / jnp.float32(n)  # 'mean'


def _reference(logits, labels, alpha, gamma, eps, label_smoothing):
    if label_smoothing > 0:
        labels = labels * (1 - label_smoothing) + label_smoothing / 2
    probs = jax.nn.sigmoid(logits)
    pt = labels * probs + (1 - labels) * (1 - probs)
    alpha_t = labels * alpha + (1 - labels) * (1 - alpha)
    fw = (1 - pt) ** gamma
    log_pt = jnp.log(jnp.clip(pt, eps, 1.0))
    return jnp.mean(-alpha_t * fw * log_pt)


if __name__ == "__main__":
    key = jax.random.PRNGKey(0)
    k1, k2 = jax.random.split(key)
    B, C, H, W = 2, 4, 16, 16
    logits = jax.random.normal(k1, (B, C, H, W), dtype=jnp.float32) * 3.0
    labels = (jax.random.uniform(k2, (B, C, H, W)) > 0.5).astype(jnp.float32)

    alpha, gamma, eps, ls = 0.25, 2.0, 1e-6, 0.1

    loss = focal_loss(logits, labels, alpha=alpha, gamma=gamma,
                      reduction="mean", eps=eps, label_smoothing=ls)
    loss = jax.block_until_ready(loss)

    ref = _reference(logits, labels, alpha, gamma, eps, ls)
    assert jnp.allclose(loss, ref, rtol=1e-5, atol=1e-6), (loss, ref)

    # Also exercise the tiled (multi-block, ragged) path with a larger shape.
    k3, k4 = jax.random.split(k1)
    big_logits = jax.random.normal(k3, (2, 3, 130, 67), dtype=jnp.float32)
    big_labels = (jax.random.uniform(k4, (2, 3, 130, 67)) > 0.5).astype(jnp.float32)
    big = jax.block_until_ready(
        focal_loss(big_logits, big_labels, alpha=alpha, gamma=gamma,
                   reduction="mean", eps=eps, label_smoothing=0.0))
    big_ref = _reference(big_logits, big_labels, alpha, gamma, eps, 0.0)
    assert jnp.allclose(big, big_ref, rtol=1e-5, atol=1e-6), (big, big_ref)

    print("KERNEL_OK")
</pallas_src>

<mosaic_0001>
module attributes {stable_mosaic.version = 11 : i64} {
  func.func @_focal_partial_kernel(%arg0: i32, %arg1: memref<16x128xf32, #tpu.memory_space<vmem>>, %arg2: memref<16x128xf32, #tpu.memory_space<vmem>>, %arg3: memref<1x128xf32, #tpu.memory_space<vmem>>) attributes {dimension_semantics = [#tpu.dimension_semantics<parallel>], iteration_bounds = array<i64: 1>, scalar_prefetch = 0 : i64, scratch_operands = 0 : i64, tpu.core_type = #tpu.core_type<tc>, window_params = [{transform_indices = @transform_0, window_bounds = array<i64: 16, 128>}, {transform_indices = @transform_1, window_bounds = array<i64: 16, 128>}, {transform_indices = @transform_2, window_bounds = array<i64: 1, 128>}]} {
    %c0 = arith.constant 0 : index
    %c0_0 = arith.constant 0 : index
    %0 = vector.load %arg1[%c0, %c0_0] : memref<16x128xf32, #tpu.memory_space<vmem>>, vector<16x128xf32>
    %c0_1 = arith.constant 0 : index
    %c0_2 = arith.constant 0 : index
    %1 = vector.load %arg2[%c0_1, %c0_2] : memref<16x128xf32, #tpu.memory_space<vmem>>, vector<16x128xf32>
    %cst = arith.constant 0.899999976 : f32
    %2 = vector.broadcast %cst : f32 to vector<16x128xf32>
    %3 = arith.mulf %1, %2 : vector<16x128xf32>
    %cst_3 = arith.constant 5.000000e-02 : f32
    %4 = vector.broadcast %cst_3 : f32 to vector<16x128xf32>
    %5 = arith.addf %3, %4 : vector<16x128xf32>
    %6 = arith.negf %0 : vector<16x128xf32>
    %7 = math.exp %6 : vector<16x128xf32>
    %cst_4 = arith.constant 1.000000e+00 : f32
    %8 = vector.broadcast %cst_4 : f32 to vector<16x128xf32>
    %9 = arith.addf %8, %7 : vector<16x128xf32>
    %10 = arith.divf %8, %9 : vector<16x128xf32>
    %11 = arith.mulf %5, %10 : vector<16x128xf32>
    %cst_5 = arith.constant 1.000000e+00 : f32
    %12 = vector.broadcast %cst_5 : f32 to vector<16x128xf32>
    %13 = arith.subf %12, %5 : vector<16x128xf32>
    %cst_6 = arith.constant 1.000000e+00 : f32
    %14 = vector.broadcast %cst_6 : f32 to vector<16x128xf32>
    %15 = arith.subf %14, %10 : vector<16x128xf32>
    %16 = arith.mulf %13, %15 : vector<16x128xf32>
    %17 = arith.addf %11, %16 : vector<16x128xf32>
    %cst_7 = arith.constant 2.500000e-01 : f32
    %18 = vector.broadcast %cst_7 : f32 to vector<16x128xf32>
    %19 = arith.mulf %5, %18 : vector<16x128xf32>
    %cst_8 = arith.constant 1.000000e+00 : f32
    %20 = vector.broadcast %cst_8 : f32 to vector<16x128xf32>
    %21 = arith.subf %20, %5 : vector<16x128xf32>
    %cst_9 = arith.constant 7.500000e-01 : f32
    %22 = vector.broadcast %cst_9 : f32 to vector<16x128xf32>
    %23 = arith.mulf %21, %22 : vector<16x128xf32>
    %24 = arith.addf %19, %23 : vector<16x128xf32>
    %cst_10 = arith.constant 1.000000e+00 : f32
    %25 = vector.broadcast %cst_10 : f32 to vector<16x128xf32>
    %26 = arith.subf %25, %17 : vector<16x128xf32>
    %27 = arith.mulf %26, %26 : vector<16x128xf32>
    %cst_11 = arith.constant 9.99999997E-7 : f32
    %cst_12 = arith.constant 1.000000e+00 : f32
    %28 = vector.broadcast %cst_11 : f32 to vector<16x128xf32>
    %29 = arith.maximumf %28, %17 : vector<16x128xf32>
    %30 = vector.broadcast %cst_12 : f32 to vector<16x128xf32>
    %31 = arith.minimumf %30, %29 : vector<16x128xf32>
    %32 = math.log %31 : vector<16x128xf32>
    %cst_13 = arith.constant 0.000000e+00 : f32
    %33 = vector.broadcast %cst_13 : f32 to vector<16x128xf32>
    %34 = arith.subf %33, %24 : vector<16x128xf32>
    %35 = arith.mulf %34, %27 : vector<16x128xf32>
    %36 = arith.mulf %35, %32 : vector<16x128xf32>
    %cst_14 = arith.constant dense<0.000000e+00> : vector<128xf32>
    %37 = vector.multi_reduction <add>, %36, %cst_14 [0] : vector<16x128xf32> to vector<128xf32>
    %38 = vector.shape_cast %37 : vector<128xf32> to vector<1x128xf32>
    %c0_15 = arith.constant 0 : index
    %c0_16 = arith.constant 0 : index
    %39 = vector.load %arg3[%c0_15, %c0_16] : memref<1x128xf32, #tpu.memory_space<vmem>>, vector<1x128xf32>
    tpu.vector_store %arg3[%c0_15, %c0_16], %38 {strides = array<i32>} : memref<1x128xf32, #tpu.memory_space<vmem>>, vector<1x128xf32>,
    return
  }
  func.func @transform_0(%arg0: i32) -> (i32, i32) {
    %c0_i32 = arith.constant 0 : i32
    %c0_i32_0 = arith.constant 0 : i32
    return %arg0, %c0_i32 : i32, i32
  }
  func.func @transform_1(%arg0: i32) -> (i32, i32) {
    %c0_i32 = arith.constant 0 : i32
    %c0_i32_0 = arith.constant 0 : i32
    return %arg0, %c0_i32 : i32, i32
  }
  func.func @transform_2(%arg0: i32) -> (i32, i32) {
    %c0_i32 = arith.constant 0 : i32
    %c0_i32_0 = arith.constant 0 : i32
    return %arg0, %c0_i32 : i32, i32
  }
}

</mosaic_0001>

<llo_original>
// kernel: tpu_custom_call.1
$region0: #{tpu_custom_call.1}
  #allocation0 [shape = 'u32[]', space=smem, size = 0x4, offset = 0x4, fixed_abs, tag = 'smem constant byte address 0x4 - core index']
  #allocation1 [shape = 'u32[72,128]{1,0:T(1,128)}', space=vmem, size = 0x9000, scoped, tag = 'internal scratch']
  %s0 = inlined_call_operand.hbm [shape: f32[16,128], index: 0, kind: input, shape index: {}]
  %s1 = inlined_call_operand.hbm [shape: f32[16,128], index: 1, kind: input, shape index: {}]
  %s2 = inlined_call_operand.hbm [shape: f32[1,128], index: 2, kind: output, shape index: {}]
  %s3 = sld [smem:[#allocation0]]
  $region26: #{tpu_custom_call.1} parent=0
    _
  %s5 = ssub.s32 1, %s3
  %s6 = scalar_select 0, %s5, %s3
  $region1: #{tpu_custom_call.1} parent=0
    #allocation2 [shape = 'u8[8192]{0}', space=vmem, size = 0x2000, scoped, tag = 'input window, operand 0, single buffered']
    #allocation3 [shape = 's32[1]{0}', space=sflag, size = 0x4, scoped, tag = 'scoped memory for tpu_custom_call.1']
    #allocation4 [shape = 's32[1]{0}', space=sflag, size = 0x4, scoped, tag = 'scoped memory for tpu_custom_call.1']
    #allocation5 [shape = 'u8[8192]{0}', space=vmem, size = 0x2000, scoped, tag = 'input window, operand 1, single buffered']
    #allocation6 [shape = 's32[1]{0}', space=sflag, size = 0x4, scoped, tag = 'scoped memory for tpu_custom_call.1']
    #allocation7 [shape = 'u8[512]{0}', space=vmem, size = 0x400, scoped, tag = 'output window, operand 0, single buffered']
    %7 = vsyncpa [#allocation3], 0
    %8 = vsyncpa [#allocation6], 0
    %9 = vsyncpa [#allocation4], 0
    // Predicated region
    $region2: #{tpu_custom_call.1} parent=1 // pred_check
      _
    $region3: #{tpu_custom_call.1} parent=1 // pred_check_branch
      %11 = sbr.rel (0) target = $region5
    $region4: #{tpu_custom_call.1} parent=1 // pred_region
      %13 = vsyncadd [#allocation3], 0
      %s14 = sshll.u32 %s0, 4
      %s15 = int_to_ptr.hbm [resolvable:$true] %s14
      %s16 = sshll.u32 [#allocation2], 4
      %s17 = int_to_ptr.vmem [resolvable:$true] %s16
      %22 = dma.hbm_to_vmem [thread:$0]  %s15, 256, %s17, [#allocation3], 128, 128, 8
    $region5: #{tpu_custom_call.1} parent=1 // pred_fallthru
      _
    // Predicated region
    $region6: #{tpu_custom_call.1} parent=1 // pred_check
      _
    $region7: #{tpu_custom_call.1} parent=1 // pred_check_branch
      %24 = sbr.rel (0) target = $region9
    $region8: #{tpu_custom_call.1} parent=1 // pred_region
      %26 = vsyncadd [#allocation6], 0
      %s27 = sshll.u32 %s1, 4
      %s28 = int_to_ptr.hbm [resolvable:$true] %s27
      %s29 = sshll.u32 [#allocation5], 4
      %s30 = int_to_ptr.vmem [resolvable:$true] %s29
      %35 = dma.hbm_to_vmem [thread:$0]  %s28, 256, %s30, [#allocation6], 128, 128, 8
    $region9: #{tpu_custom_call.1} parent=1 // pred_fallthru
      _
    // Predicated region
    $region10: #{tpu_custom_call.1} parent=1 // pred_check
      _
    $region11: #{tpu_custom_call.1} parent=1 // pred_check_branch
      %37 = sbr.rel (0) target = $region13
    $region12: #{tpu_custom_call.1} parent=1 // pred_region
      %39 = dma.done [#allocation3], 256
    $region13: #{tpu_custom_call.1} parent=1 // pred_fallthru
      _
    // Predicated region
    $region14: #{tpu_custom_call.1} parent=1 // pred_check
      _
    $region15: #{tpu_custom_call.1} parent=1 // pred_check_branch
      %41 = sbr.rel (0) target = $region17
    $region16: #{tpu_custom_call.1} parent=1 // pred_region
      %43 = dma.done [#allocation6], 256
    $region17: #{tpu_custom_call.1} parent=1 // pred_fallthru
      _
    %v44 = vld [vmem:[#allocation2] sm:$0xff]
    %v45 = vld [vmem:[#allocation2 + $0x8] sm:$0xff]
    %v46 = vld [vmem:[#allocation5] sm:$0xff]
    %v47 = vld [vmem:[#allocation5 + $0x8] sm:$0xff]
    %v48 = vmul.f32 %v46, 0.9
    %v49 = vmul.f32 %v47, 0.9
    %v50 = vadd.f32 %v48, 0.05
    %v51 = vadd.f32 %v49, 0.05
    %v52 = vxor.u32 %v44, 2147483648
    %v53 = vxor.u32 %v45, 2147483648
    %v54 = vmul.f32 %v52, 1.442695
    %v55 = vpow.pop %v54
    %v56 = vmul.f32 %v53, 1.442695
    %v57 = vpow.pop %v56
    %v58 = vadd.f32 %v55, 1.0
    %v59 = vadd.f32 %v57, 1.0
    %v60 = vrcp.pop %v58
    %v61 = vmul.f32 %v58, %v60
    %v62 = vsub.f32 1.0, %v61
    %v63 = vmul.f32 %v60, %v62
    %v64 = vadd.f32 %v60, %v63
    %vm65 = vweird.f32 %v58
    %vm66 = vweird.f32 %v60
    %vm67 = vmor %vm65, %vm66
    %v68 = vsel %vm67, %v60, %v64
    %v69 = vand.u32 2147483647, %v58
    %vm70 = vcmp.eq.f32.partialorder %v69, 8.507059e+37
    %v71 = vand.u32 %v58, 2147483648
    %v72 = vor.u32 1.1754944e-38, %v71
    %v73 = vsel %vm70, %v72, %v68
    %v74 = vmul.f32 1.0, %v73
    %v75 = vrcp.pop %v59
    %v76 = vmul.f32 %v59, %v75
    %v77 = vsub.f32 1.0, %v76
    %v78 = vmul.f32 %v75, %v77
    %v79 = vadd.f32 %v75, %v78
    %vm80 = vweird.f32 %v59
    %vm81 = vweird.f32 %v75
    %vm82 = vmor %vm80, %vm81
    %v83 = vsel %vm82, %v75, %v79
    %v84 = vand.u32 2147483647, %v59
    %vm85 = vcmp.eq.f32.partialorder %v84, 8.507059e+37
    %v86 = vand.u32 %v59, 2147483648
    %v87 = vor.u32 1.1754944e-38, %v86
    %v88 = vsel %vm85, %v87, %v83
    %v89 = vmul.f32 1.0, %v88
    %v90 = vmul.f32 %v50, %v74
    %v91 = vmul.f32 %v51, %v89
    %v92 = vsub.f32 1.0, %v50
    %v93 = vsub.f32 1.0, %v51
    %v94 = vsub.f32 1.0, %v74
    %v95 = vsub.f32 1.0, %v89
    %v96 = vmul.f32 %v92, %v94
    %v97 = vmul.f32 %v93, %v95
    %v98 = vadd.f32 %v90, %v96
    %v99 = vadd.f32 %v91, %v97
    %v100 = vmul.f32 %v50, 0.25
    %v101 = vmul.f32 %v51, 0.25
    %v102 = vmul.f32 %v92, 0.75
    %v103 = vmul.f32 %v93, 0.75
    %v104 = vadd.f32 %v100, %v102
    %v105 = vadd.f32 %v101, %v103
    %v106 = vsub.f32 1.0, %v98
    %v107 = vsub.f32 1.0, %v99
    %v108 = vmul.f32 %v106, %v106
    %v109 = vmul.f32 %v107, %v107
    %v110 = vmax.f32 %v98, 1e-06
    %v111 = vmax.f32 %v99, 1e-06
    %v112 = vmin.f32 %v110, 1.0
    %v113 = vmin.f32 %v111, 1.0
    %v114 = vlog2.pop %v112
    %v115 = vmul.f32 %v114, 0.6931472
    %v116 = vlog2.pop %v113
    %v117 = vmul.f32 %v116, 0.6931472
    %v118 = vsub.f32 0.0, %v104
    %v119 = vsub.f32 0.0, %v105
    %v120 = vmul.f32 %v118, %v108
    %v121 = vmul.f32 %v119, %v109
    %v122 = vmul.f32 %v120, %v115
    %v123 = vmul.f32 %v121, %v117
    %v124 = vadd.f32 %v122, %v123
    %v125 = vrot.slane %v124, 4
    %v126 = vadd.f32 %v124, %v125
    %v127 = vrot.slane %v126, 2
    %v128 = vadd.f32 %v126, %v127
    %v129 = vrot.slane %v128, 1
    %v130 = vadd.f32 %v128, %v129
    %131 = vst [vmem:[#allocation7] sm:$0x1] %v130
    // Predicated region
    $region18: #{tpu_custom_call.1} parent=1 // pred_check
      _
    $region19: #{tpu_custom_call.1} parent=1 // pred_check_branch
      %133 = sbr.rel (0) target = $region21
    $region20: #{tpu_custom_call.1} parent=1 // pred_region
      %135 = vsyncadd [#allocation4], 0
      %s137 = sshll.u32 [#allocation7], 4
      %s138 = int_to_ptr.vmem [resolvable:$true] %s137
      %s139 = sshll.u32 %s2, 4
      %s140 = int_to_ptr.hbm [resolvable:$true] %s139
      %142 = dma.vmem_to_hbm [thread:$0]  %s138, 16, %s140, [#allocation4]
    $region21: #{tpu_custom_call.1} parent=1 // pred_fallthru
      _
    // Predicated region
    $region22: #{tpu_custom_call.1} parent=1 // pred_check
      _
    $region23: #{tpu_custom_call.1} parent=1 // pred_check_branch
      %144 = sbr.rel (0) target = $region25
    $region24: #{tpu_custom_call.1} parent=1 // pred_region
      %146 = dma.done [#allocation4], 16
    $region25: #{tpu_custom_call.1} parent=1 // pred_fallthru
      _
    %147 = vsyncpa [#allocation3], 1
    %148 = vsyncpa [#allocation6], 1
    %149 = vsyncpa [#allocation4], 1

</llo_original>
